<compile_context>
chip_gen: v5e
topology: v5e:2x2
jax: 0.10.0
libtpu: 0.0.40
codegen_flags: <defaults>
</compile_context>

<pallas_src>
import functools

import jax
import jax.numpy as jnp
from jax import lax
from jax.experimental import pallas as pl
from jax.experimental.pallas import tpu as pltpu

MARGIN = 1.0


def _pick_tile(dim, pref, align):
    """Largest multiple of `align` that divides `dim` and is <= pref; else whole dim."""
    if dim <= pref:
        return dim
    t = (pref // align) * align
    while t >= align:
        if dim % t == 0:
            return t
        t -= align
    return dim


def _tile_plan(Q, P, D, itemsize, budget_bytes=12 << 20):
    """(tm, tn, tk): q fully resident, lane-dense p/scores tiles, K collapsed if it fits."""
    tm = Q                                # hold all of q_reps resident across the grid
    tn = _pick_tile(P, 1024, 128)         # big lane-dense passage / scores tiles
    tk = D                                # collapse the contraction axis when possible

    def footprint(tn_, tk_):
        # double-buffered bf16 input tiles + double-buffered f32 scores tile (+ tiny pos/mneg)
        return 2 * itemsize * (tm * tk_ + tn_ * tk_) + 2 * 4 * tm * tn_ + 4 * 4 * tm

    while footprint(tn, tk) > budget_bytes and tn > 128:
        tn = _pick_tile(P, tn // 2, 128)
    if footprint(tn, tk) > budget_bytes:
        tk = _pick_tile(D, 512, 128)
    return tm, tn, tk


def _loss_update(s, pos_ref, mneg_ref, i, j, group):
    """Fold one [tm, tn] scores tile into the running per-row (pos, max_neg)."""
    tm, tn = s.shape
    row = lax.broadcasted_iota(jnp.int32, (tm, 1), 0) + i * tm
    col = lax.broadcasted_iota(jnp.int32, (tm, tn), 1) + j * tn
    # Exactly one target column per row over the whole P axis (target = row * group,
    # guaranteed by P % Q == 0), so the masked row-sum picks out the single positive.
    is_pos = col == row * group
    pos_ref[...] += jnp.sum(jnp.where(is_pos, s, 0.0), axis=1, keepdims=True)
    neg = jnp.where(is_pos, -jnp.inf, s)
    mneg_ref[...] = jnp.maximum(mneg_ref[...], jnp.max(neg, axis=1, keepdims=True))


def _fused_sim_loss_kernel(q_ref, p_ref, s_ref, pos_ref, mneg_ref, *, group, n_k):
    # q_ref: [tm, tk], p_ref: [tn, tk], s_ref: [tm, tn] f32,
    # pos_ref / mneg_ref: [tm, 1] f32 (resident accumulators across j and k).
    i = pl.program_id(0)
    j = pl.program_id(1)
    k = pl.program_id(2)

    @pl.when(jnp.logical_and(j == 0, k == 0))
    def _():
        pos_ref[...] = jnp.zeros_like(pos_ref)
        mneg_ref[...] = jnp.full_like(mneg_ref, -jnp.inf)

    # q @ p.T without materializing p.T (flash-attention-style QK^T contraction on
    # the last dim of both operands; no per-tile XLU transpose).
    part = lax.dot_general(
        q_ref[...], p_ref[...],
        dimension_numbers=(((1,), (1,)), ((), ())),
        preferred_element_type=jnp.float32,
    )

    if n_k == 1:
        # K collapsed: single dot, direct write, loss update on the in-register tile.
        s_ref[...] = part
        _loss_update(part, pos_ref, mneg_ref, i, j, group)
    else:
        # K-tiled fallback: accumulate straight into the resident scores output block
        # (its block index is constant across k) — no separate acc scratch, no copy.
        @pl.when(k == 0)
        def _():
            s_ref[...] = part

        @pl.when(k > 0)
        def _():
            s_ref[...] += part

        @pl.when(k == n_k - 1)
        def _():
            _loss_update(s_ref[...], pos_ref, mneg_ref, i, j, group)


def encoder_model_forward(q_reps, p_reps, *, margin=MARGIN, tm=None, tn=None, tk=None):
    """Returns (scores [Q,P] f32, loss [] f32) matching EncoderModel.forward (training, no DDP)."""
    Q, D = q_reps.shape
    P, D2 = p_reps.shape
    assert D == D2 and P % Q == 0, "P must be a multiple of Q (group structure)"
    group = P // Q

    a_tm, a_tn, a_tk = _tile_plan(Q, P, D, jnp.dtype(q_reps.dtype).itemsize)
    tm_ = tm or a_tm
    tn_ = tn or a_tn
    tk_ = tk or a_tk
    assert Q % tm_ == 0 and P % tn_ == 0 and D % tk_ == 0
    n_k = D // tk_

    kernel = functools.partial(_fused_sim_loss_kernel, group=group, n_k=n_k)

    scores, pos, mneg = pl.pallas_call(
        kernel,
        out_shape=(
            jax.ShapeDtypeStruct((Q, P), jnp.float32),
            jax.ShapeDtypeStruct((Q, 1), jnp.float32),
            jax.ShapeDtypeStruct((Q, 1), jnp.float32),
        ),
        grid_spec=pltpu.PrefetchScalarGridSpec(
            num_scalar_prefetch=0,
            grid=(Q // tm_, P // tn_, n_k),
            in_specs=[
                # q block index constant across j (and k when collapsed) -> resident.
                pl.BlockSpec((tm_, tk_), lambda i, j, k: (i, k)),
                # p streamed from HBM exactly once over the j axis.
                pl.BlockSpec((tn_, tk_), lambda i, j, k: (j, k)),
            ],
            out_specs=[
                pl.BlockSpec((tm_, tn_), lambda i, j, k: (i, j)),  # lane-dense scores writeback
                pl.BlockSpec((tm_, 1), lambda i, j, k: (i, 0)),    # running positive score
                pl.BlockSpec((tm_, 1), lambda i, j, k: (i, 0)),    # running max negative score
            ],
        ),
        compiler_params=pltpu.CompilerParams(
            dimension_semantics=("parallel", "arbitrary", "arbitrary"),
        ),
    )(q_reps, p_reps)

    # Tiny [Q] finalize in plain JAX (no serial SMEM scalar carried through the grid).
    loss = jnp.mean(jnp.maximum(jnp.float32(margin) - pos[:, 0] + mneg[:, 0], 0.0))
    return scores, loss


def reference_forward(q_reps, p_reps, margin=MARGIN):
    """Pure-JAX reference of the PyTorch semantics for validation."""
    q = q_reps.astype(jnp.float32)
    p = p_reps.astype(jnp.float32)
    scores = q @ p.T
    Q, P = scores.shape
    target = jnp.arange(Q) * (P // Q)
    pos = scores[jnp.arange(Q), target]
    neg = scores.at[jnp.arange(Q), target].set(-jnp.inf)
    max_neg = neg.max(axis=1)
    loss = jnp.maximum(margin - pos + max_neg, 0.0).mean()
    return scores, loss


if __name__ == "__main__":
    key = jax.random.PRNGKey(0)
    kq, kp = jax.random.split(key)

    # 16 queries, 16 passages per query group, hidden=256; bf16 reps (MXU-native).
    Q, P, D = 16, 256, 256
    q_reps = jax.random.normal(kq, (Q, D), dtype=jnp.float32).astype(jnp.bfloat16)
    p_reps = jax.random.normal(kp, (P, D), dtype=jnp.float32).astype(jnp.bfloat16)

    ref_scores, ref_loss = reference_forward(q_reps, p_reps)

    # Exercise the three code paths at toy shapes:
    #   1) auto plan (tm=Q, tn=P, tk=D): single fused step, K collapsed;
    #   2) multiple passage tiles: running (pos, max_neg) accumulation over j;
    #   3) K-tiled fallback: in-place accumulation into the scores output block.
    configs = [dict(), dict(tn=128), dict(tn=128, tk=128)]
    for cfg in configs:
        scores, loss = encoder_model_forward(q_reps, p_reps, **cfg)
        jax.block_until_ready((scores, loss))
        assert jnp.allclose(scores, ref_scores, atol=1e-3, rtol=1e-3), (
            cfg, float(jnp.max(jnp.abs(scores - ref_scores))))
        assert jnp.allclose(loss, ref_loss, atol=1e-3, rtol=1e-3), (
            cfg, float(loss), float(ref_loss))

    print("KERNEL_OK")
</pallas_src>

<mosaic_0001>
module attributes {stable_mosaic.version = 11 : i64} {
  func.func @_fused_sim_loss_kernel(%arg0: i32, %arg1: i32, %arg2: i32, %arg3: memref<16x256xbf16, #tpu.memory_space<vmem>>, %arg4: memref<256x256xbf16, #tpu.memory_space<vmem>>, %arg5: memref<16x256xf32, #tpu.memory_space<vmem>>, %arg6: memref<16x1xf32, #tpu.memory_space<vmem>>, %arg7: memref<16x1xf32, #tpu.memory_space<vmem>>) attributes {dimension_semantics = [#tpu.dimension_semantics<parallel>, #tpu.dimension_semantics<arbitrary>, #tpu.dimension_semantics<arbitrary>], iteration_bounds = array<i64: 1, 1, 1>, scalar_prefetch = 0 : i64, scratch_operands = 0 : i64, tpu.core_type = #tpu.core_type<tc>, window_params = [{transform_indices = @transform_0, window_bounds = array<i64: 16, 256>}, {transform_indices = @transform_1, window_bounds = array<i64: 256, 256>}, {transform_indices = @transform_2, window_bounds = array<i64: 16, 256>}, {transform_indices = @transform_3, window_bounds = array<i64: 16, 1>}, {transform_indices = @transform_4, window_bounds = array<i64: 16, 1>}]} {
    %c0_i32 = arith.constant 0 : i32
    %0 = arith.cmpi eq, %arg1, %c0_i32 : i32
    %c0_i32_0 = arith.constant 0 : i32
    %1 = arith.cmpi eq, %arg2, %c0_i32_0 : i32
    %2 = arith.andi %0, %1 : i1
    %3 = arith.extui %2 : i1 to i32
    %c0_i32_1 = arith.constant 0 : i32
    %4 = arith.cmpi ne, %3, %c0_i32_1 : i32
    scf.if %4 {
      %cst_20 = arith.constant 0.000000e+00 : f32
      %35 = vector.broadcast %cst_20 : f32 to vector<16x1xf32>
      %c0_21 = arith.constant 0 : index
      %c0_22 = arith.constant 0 : index
      %36 = vector.load %arg6[%c0_21, %c0_22] : memref<16x1xf32, #tpu.memory_space<vmem>>, vector<16x1xf32>
      tpu.vector_store %arg6[%c0_21, %c0_22], %35 {strides = array<i32>} : memref<16x1xf32, #tpu.memory_space<vmem>>, vector<16x1xf32>,
      %cst_23 = arith.constant 0xFF800000 : f32
      %37 = vector.broadcast %cst_23 : f32 to vector<16x1xf32>
      %c0_24 = arith.constant 0 : index
      %c0_25 = arith.constant 0 : index
      %38 = vector.load %arg7[%c0_24, %c0_25] : memref<16x1xf32, #tpu.memory_space<vmem>>, vector<16x1xf32>
      tpu.vector_store %arg7[%c0_24, %c0_25], %37 {strides = array<i32>} : memref<16x1xf32, #tpu.memory_space<vmem>>, vector<16x1xf32>,
    } else {
    }
    %c0 = arith.constant 0 : index
    %c0_2 = arith.constant 0 : index
    %5 = vector.load %arg3[%c0, %c0_2] : memref<16x256xbf16, #tpu.memory_space<vmem>>, vector<16x256xbf16>
    %c0_3 = arith.constant 0 : index
    %c0_4 = arith.constant 0 : index
    %6 = vector.load %arg4[%c0_3, %c0_4] : memref<256x256xbf16, #tpu.memory_space<vmem>>, vector<256x256xbf16>
    %cst = arith.constant dense<0.000000e+00> : vector<16x256xf32>
    %7 = tpu.matmul %5, %6, %cst {dimension_numbers = #tpu.dot_dimension_numbers<[1], [1], [0], [0], [0, 0, 1, 0], [], []>} : vector<16x256xbf16>, vector<256x256xbf16>, vector<16x256xf32> -> vector<16x256xf32>
    %c0_5 = arith.constant 0 : index
    %c0_6 = arith.constant 0 : index
    %8 = vector.load %arg5[%c0_5, %c0_6] : memref<16x256xf32, #tpu.memory_space<vmem>>, vector<16x256xf32>
    tpu.vector_store %arg5[%c0_5, %c0_6], %7 {strides = array<i32>} : memref<16x256xf32, #tpu.memory_space<vmem>>, vector<16x256xf32>,
    %9 = tpu.iota {dimensions = array<i32: 0>} : vector<16x1xi32>
    %c16_i32 = arith.constant 16 : i32
    %10 = arith.muli %arg0, %c16_i32 : i32
    %11 = vector.broadcast %10 : i32 to vector<16x1xi32>
    %12 = arith.addi %9, %11 : vector<16x1xi32>
    %13 = tpu.iota {dimensions = array<i32: 1>} : vector<16x256xi32>
    %c256_i32 = arith.constant 256 : i32
    %14 = arith.muli %arg1, %c256_i32 : i32
    %15 = vector.broadcast %14 : i32 to vector<16x256xi32>
    %16 = arith.addi %13, %15 : vector<16x256xi32>
    %c16_i32_7 = arith.constant 16 : i32
    %17 = vector.broadcast %c16_i32_7 : i32 to vector<16x1xi32>
    %18 = arith.muli %12, %17 : vector<16x1xi32>
    %19 = vector.broadcast %18 : vector<16x1xi32> to vector<16x256xi32>
    %20 = arith.cmpi eq, %16, %19 : vector<16x256xi32>
    %c0_8 = arith.constant 0 : index
    %c0_9 = arith.constant 0 : index
    %21 = vector.load %arg6[%c0_8, %c0_9] : memref<16x1xf32, #tpu.memory_space<vmem>>, vector<16x1xf32>
    %cst_10 = arith.constant 0.000000e+00 : f32
    %22 = vector.broadcast %cst_10 : f32 to vector<16x256xf32>
    %23 = arith.select %20, %7, %22 : vector<16x256xi1>, vector<16x256xf32>
    %cst_11 = arith.constant dense<0.000000e+00> : vector<16xf32>
    %24 = vector.multi_reduction <add>, %23, %cst_11 [1] : vector<16x256xf32> to vector<16xf32>
    %25 = vector.shape_cast %24 : vector<16xf32> to vector<16x1xf32>
    %26 = arith.addf %21, %25 : vector<16x1xf32>
    %c0_12 = arith.constant 0 : index
    %c0_13 = arith.constant 0 : index
    %27 = vector.load %arg6[%c0_12, %c0_13] : memref<16x1xf32, #tpu.memory_space<vmem>>, vector<16x1xf32>
    tpu.vector_store %arg6[%c0_12, %c0_13], %26 {strides = array<i32>} : memref<16x1xf32, #tpu.memory_space<vmem>>, vector<16x1xf32>,
    %cst_14 = arith.constant 0xFF800000 : f32
    %28 = vector.broadcast %cst_14 : f32 to vector<16x256xf32>
    %29 = arith.select %20, %28, %7 : vector<16x256xi1>, vector<16x256xf32>
    %c0_15 = arith.constant 0 : index
    %c0_16 = arith.constant 0 : index
    %30 = vector.load %arg7[%c0_15, %c0_16] : memref<16x1xf32, #tpu.memory_space<vmem>>, vector<16x1xf32>
    %cst_17 = arith.constant dense<0xFF800000> : vector<16xf32>
    %31 = vector.multi_reduction <maximumf>, %29, %cst_17 [1] : vector<16x256xf32> to vector<16xf32>
    %32 = vector.shape_cast %31 : vector<16xf32> to vector<16x1xf32>
    %33 = arith.maximumf %30, %32 : vector<16x1xf32>
    %c0_18 = arith.constant 0 : index
    %c0_19 = arith.constant 0 : index
    %34 = vector.load %arg7[%c0_18, %c0_19] : memref<16x1xf32, #tpu.memory_space<vmem>>, vector<16x1xf32>
    tpu.vector_store %arg7[%c0_18, %c0_19], %33 {strides = array<i32>} : memref<16x1xf32, #tpu.memory_space<vmem>>, vector<16x1xf32>,
    return
  }
  func.func @transform_0(%arg0: i32, %arg1: i32, %arg2: i32) -> (i32, i32) {
    %c0_i32 = arith.constant 0 : i32
    return %arg0, %arg2 : i32, i32
  }
  func.func @transform_1(%arg0: i32, %arg1: i32, %arg2: i32) -> (i32, i32) {
    %c0_i32 = arith.constant 0 : i32
    return %arg1, %arg2 : i32, i32
  }
  func.func @transform_2(%arg0: i32, %arg1: i32, %arg2: i32) -> (i32, i32) {
    %c0_i32 = arith.constant 0 : i32
    return %arg0, %arg1 : i32, i32
  }
  func.func @transform_3(%arg0: i32, %arg1: i32, %arg2: i32) -> (i32, i32) {
    %c0_i32 = arith.constant 0 : i32
    %c0_i32_0 = arith.constant 0 : i32
    return %arg0, %c0_i32 : i32, i32
  }
  func.func @transform_4(%arg0: i32, %arg1: i32, %arg2: i32) -> (i32, i32) {
    %c0_i32 = arith.constant 0 : i32
    %c0_i32_0 = arith.constant 0 : i32
    return %arg0, %c0_i32 : i32, i32
  }
}

</mosaic_0001>

<llo_original>
// kernel: tpu_custom_call.1
$region0: #{tpu_custom_call.1}
  #allocation0 [shape = 'u32[]', space=smem, size = 0x4, offset = 0x4, fixed_abs, tag = 'smem constant byte address 0x4 - core index']
  #allocation1 [shape = 'u32[72,128]{1,0:T(1,128)}', space=vmem, size = 0x9000, scoped, tag = 'internal scratch']
  %s0 = inlined_call_operand.hbm [shape: bf16[16,256], index: 0, kind: input, shape index: {}]
  %s1 = inlined_call_operand.hbm [shape: bf16[256,256], index: 1, kind: input, shape index: {}]
  %s2 = inlined_call_operand.hbm [shape: f32[16,256], index: 2, kind: output, shape index: {0}]
  %s3 = inlined_call_operand.vmem [shape: f32[16,1], index: 3, kind: output, shape index: {1}]
  %s4 = inlined_call_operand.vmem [shape: f32[16,1], index: 4, kind: output, shape index: {2}]
  %5 = xla_tuple %s2, %s3, %s4
  %s6 = sld [smem:[#allocation0]]
  $region46: #{tpu_custom_call.1} parent=0
    _
  %s8 = ssub.s32 1, %s6
  %s9 = scalar_select 0, %s8, %s6
  $region1: #{tpu_custom_call.1} parent=0
    #allocation2 [shape = 'u8[8192]{0}', space=vmem, size = 0x2000, scoped, tag = 'input window, operand 0, single buffered']
    #allocation3 [shape = 's32[1]{0}', space=sflag, size = 0x4, scoped, tag = 'scoped memory for tpu_custom_call.1']
    #allocation4 [shape = 's32[1]{0}', space=sflag, size = 0x4, scoped, tag = 'scoped memory for tpu_custom_call.1']
    #allocation5 [shape = 'u8[131072]{0}', space=vmem, size = 0x20000, scoped, tag = 'input window, operand 1, single buffered']
    #allocation6 [shape = 's32[1]{0}', space=sflag, size = 0x4, scoped, tag = 'scoped memory for tpu_custom_call.1']
    #allocation7 [shape = 'u8[16384]{0}', space=vmem, size = 0x4000, scoped, tag = 'output window, operand 0, single buffered']
    %10 = vsyncpa [#allocation3], 0
    %11 = vsyncpa [#allocation6], 0
    %12 = vsyncpa [#allocation4], 0
    // Predicated region
    $region2: #{tpu_custom_call.1} parent=1 // pred_check
      _
    $region3: #{tpu_custom_call.1} parent=1 // pred_check_branch
      %14 = sbr.rel (0) target = $region5
    $region4: #{tpu_custom_call.1} parent=1 // pred_region
      %16 = vsyncadd [#allocation3], 0
      %s17 = sshll.u32 %s0, 4
      %s18 = int_to_ptr.hbm [resolvable:$true] %s17
      %s19 = sshll.u32 [#allocation2], 4
      %s20 = int_to_ptr.vmem [resolvable:$true] %s19
      %25 = dma.hbm_to_vmem [thread:$0]  %s18, 256, %s20, [#allocation3], 128, 128, 8
    $region5: #{tpu_custom_call.1} parent=1 // pred_fallthru
      _
    // Predicated region
    $region6: #{tpu_custom_call.1} parent=1 // pred_check
      _
    $region7: #{tpu_custom_call.1} parent=1 // pred_check_branch
      %27 = sbr.rel (0) target = $region9
    $region8: #{tpu_custom_call.1} parent=1 // pred_region
      %29 = vsyncadd [#allocation6], 0
      %s30 = sshll.u32 %s1, 4
      %s31 = int_to_ptr.hbm [resolvable:$true] %s30
      %s32 = sshll.u32 [#allocation5], 4
      %s33 = int_to_ptr.vmem [resolvable:$true] %s32
      %38 = dma.hbm_to_vmem [thread:$0]  %s31, 4096, %s33, [#allocation6], 128, 128, 8
    $region9: #{tpu_custom_call.1} parent=1 // pred_fallthru
      _
    // Predicated region
    $region10: #{tpu_custom_call.1} parent=1 // pred_check
      _
    $region11: #{tpu_custom_call.1} parent=1 // pred_check_branch
      %40 = sbr.rel (0) target = $region13
    $region12: #{tpu_custom_call.1} parent=1 // pred_region
      %42 = dma.done [#allocation3], 256
    $region13: #{tpu_custom_call.1} parent=1 // pred_fallthru
      _
    // Predicated region
    $region14: #{tpu_custom_call.1} parent=1 // pred_check
      _
    $region15: #{tpu_custom_call.1} parent=1 // pred_check_branch
      %44 = sbr.rel (0) target = $region17
    $region16: #{tpu_custom_call.1} parent=1 // pred_region
      %46 = dma.done [#allocation6], 4096
    $region17: #{tpu_custom_call.1} parent=1 // pred_fallthru
      _
    %p47 = scmp.eq.s32.totalorder 0, 0
    %p48 = scmp.eq.s32.totalorder 0, 0
    %p49 = pnand %p47, %p48
    %p50 = pneg %p49
    // Predicated region
    $region18: #{tpu_custom_call.1} parent=1 // pred_check
      _
    $region19: #{tpu_custom_call.1} parent=1 // pred_check_branch
      %52 = sbr.rel (%p49) target = $region21
    $region20: #{tpu_custom_call.1} parent=1 // pred_region
      %vm53 = vcmask 7168
      %54 = vst.msk [vmem:[%s3] sm:$0xff] %vm53, 0.0
      %55 = vst.msk [vmem:[%s3 + $0x8] sm:$0xff] %vm53, 0.0
      %56 = vst.msk [vmem:[%s4] sm:$0xff] %vm53, -inf
      %57 = vst.msk [vmem:[%s4 + $0x8] sm:$0xff] %vm53, -inf
    $region21: #{tpu_custom_call.1} parent=1 // pred_fallthru
      _
    %v58 = vld [vmem:[#allocation2] sm:$0xff]
    %v59 = vld [vmem:[#allocation2 + $0x8] sm:$0xff]
    %v60 = vld [vmem:[#allocation5] sm:$0xff]
    %v61 = vld [vmem:[#allocation5 + $0x8] sm:$0xff]
    %v62 = vld [vmem:[#allocation5 + $0x10] sm:$0xff]
    %v63 = vld [vmem:[#allocation5 + $0x18] sm:$0xff]
    %v64 = vld [vmem:[#allocation5 + $0x20] sm:$0xff]
    %v65 = vld [vmem:[#allocation5 + $0x28] sm:$0xff]
    %v66 = vld [vmem:[#allocation5 + $0x30] sm:$0xff]
    %v67 = vld [vmem:[#allocation5 + $0x38] sm:$0xff]
    %v68 = vld [vmem:[#allocation5 + $0x40] sm:$0xff]
    %v69 = vld [vmem:[#allocation5 + $0x48] sm:$0xff]
    %v70 = vld [vmem:[#allocation5 + $0x50] sm:$0xff]
    %v71 = vld [vmem:[#allocation5 + $0x58] sm:$0xff]
    %v72 = vld [vmem:[#allocation5 + $0x60] sm:$0xff]
    %v73 = vld [vmem:[#allocation5 + $0x68] sm:$0xff]
    %v74 = vld [vmem:[#allocation5 + $0x70] sm:$0xff]
    %v75 = vld [vmem:[#allocation5 + $0x78] sm:$0xff]
    %v76 = vld [vmem:[#allocation5 + $0x80] sm:$0xff]
    %v77 = vld [vmem:[#allocation5 + $0x88] sm:$0xff]
    %v78 = vld [vmem:[#allocation5 + $0x90] sm:$0xff]
    %v79 = vld [vmem:[#allocation5 + $0x98] sm:$0xff]
    %v80 = vld [vmem:[#allocation5 + $0xa0] sm:$0xff]
    %v81 = vld [vmem:[#allocation5 + $0xa8] sm:$0xff]
    %v82 = vld [vmem:[#allocation5 + $0xb0] sm:$0xff]
    %v83 = vld [vmem:[#allocation5 + $0xb8] sm:$0xff]
    %v84 = vld [vmem:[#allocation5 + $0xc0] sm:$0xff]
    %v85 = vld [vmem:[#allocation5 + $0xc8] sm:$0xff]
    %v86 = vld [vmem:[#allocation5 + $0xd0] sm:$0xff]
    %v87 = vld [vmem:[#allocation5 + $0xd8] sm:$0xff]
    %v88 = vld [vmem:[#allocation5 + $0xe0] sm:$0xff]
    %v89 = vld [vmem:[#allocation5 + $0xe8] sm:$0xff]
    %v90 = vld [vmem:[#allocation5 + $0xf0] sm:$0xff]
    %v91 = vld [vmem:[#allocation5 + $0xf8] sm:$0xff]
    %v94 = vunpack.c.l.b16 %v58
    %v95 = vunpack.c.h.b16 %v58
    %v96 = vunpack.c.l.b16 %v59
    %v97 = vunpack.c.h.b16 %v59
    %v98 = vpack.c.b16 %v96, %v94
    %v99 = vpack.c.b16 %v97, %v95
    %v134 = vunpack.c.l.b16 %v60
    %v135 = vunpack.c.h.b16 %v60
    %v136 = vunpack.c.l.b16 %v61
    %v137 = vunpack.c.h.b16 %v61
    %v138 = vunpack.c.l.b16 %v62
    %v139 = vunpack.c.h.b16 %v62
    %v140 = vunpack.c.l.b16 %v63
    %v141 = vunpack.c.h.b16 %v63
    %v142 = vunpack.c.l.b16 %v64
    %v143 = vunpack.c.h.b16 %v64
    %v144 = vunpack.c.l.b16 %v65
    %v145 = vunpack.c.h.b16 %v65
    %v146 = vunpack.c.l.b16 %v66
    %v147 = vunpack.c.h.b16 %v66
    %v148 = vunpack.c.l.b16 %v67
    %v149 = vunpack.c.h.b16 %v67
    %v150 = vunpack.c.l.b16 %v68
    %v151 = vunpack.c.h.b16 %v68
    %v152 = vunpack.c.l.b16 %v69
    %v153 = vunpack.c.h.b16 %v69
    %v154 = vunpack.c.l.b16 %v70
    %v155 = vunpack.c.h.b16 %v70
    %v156 = vunpack.c.l.b16 %v71
    %v157 = vunpack.c.h.b16 %v71
    %v158 = vunpack.c.l.b16 %v72
    %v159 = vunpack.c.h.b16 %v72
    %v160 = vunpack.c.l.b16 %v73
    %v161 = vunpack.c.h.b16 %v73
    %v162 = vunpack.c.l.b16 %v74
    %v163 = vunpack.c.h.b16 %v74
    %v164 = vunpack.c.l.b16 %v75
    %v165 = vunpack.c.h.b16 %v75
    %v166 = vunpack.c.l.b16 %v76
    %v167 = vunpack.c.h.b16 %v76
    %v168 = vunpack.c.l.b16 %v77
    %v169 = vunpack.c.h.b16 %v77
    %v170 = vunpack.c.l.b16 %v78
    %v171 = vunpack.c.h.b16 %v78
    %v172 = vunpack.c.l.b16 %v79
    %v173 = vunpack.c.h.b16 %v79
    %v174 = vunpack.c.l.b16 %v80
    %v175 = vunpack.c.h.b16 %v80
    %v176 = vunpack.c.l.b16 %v81
    %v177 = vunpack.c.h.b16 %v81
    %v178 = vunpack.c.l.b16 %v82
    %v179 = vunpack.c.h.b16 %v82
    %v180 = vunpack.c.l.b16 %v83
    %v181 = vunpack.c.h.b16 %v83
    %v182 = vunpack.c.l.b16 %v84
    %v183 = vunpack.c.h.b16 %v84
    %v184 = vunpack.c.l.b16 %v85
    %v185 = vunpack.c.h.b16 %v85
    %v186 = vunpack.c.l.b16 %v86
    %v187 = vunpack.c.h.b16 %v86
    %v188 = vunpack.c.l.b16 %v87
    %v189 = vunpack.c.h.b16 %v87
    %v190 = vunpack.c.l.b16 %v88
    %v191 = vunpack.c.h.b16 %v88
    %v192 = vunpack.c.l.b16 %v89
    %v193 = vunpack.c.h.b16 %v89
    %v194 = vunpack.c.l.b16 %v90
    %v195 = vunpack.c.h.b16 %v90
    %v196 = vunpack.c.l.b16 %v91
    %v197 = vunpack.c.h.b16 %v91
    %v198 = vpack.c.b16 %v136, %v134
    %v199 = vpack.c.b16 %v137, %v135
    %v200 = vpack.c.b16 %v140, %v138
    %v201 = vpack.c.b16 %v141, %v139
    %v202 = vpack.c.b16 %v144, %v142
    %v203 = vpack.c.b16 %v145, %v143
    %v204 = vpack.c.b16 %v148, %v146
    %v205 = vpack.c.b16 %v149, %v147
    %v206 = vpack.c.b16 %v152, %v150
    %v207 = vpack.c.b16 %v153, %v151
    %v208 = vpack.c.b16 %v156, %v154
    %v209 = vpack.c.b16 %v157, %v155
    %v210 = vpack.c.b16 %v160, %v158
    %v211 = vpack.c.b16 %v161, %v159
    %v212 = vpack.c.b16 %v164, %v162
    %v213 = vpack.c.b16 %v165, %v163
    %v214 = vpack.c.b16 %v168, %v166
    %v215 = vpack.c.b16 %v169, %v167
    %v216 = vpack.c.b16 %v172, %v170
    %v217 = vpack.c.b16 %v173, %v171
    %v218 = vpack.c.b16 %v176, %v174
    %v219 = vpack.c.b16 %v177, %v175
    %v220 = vpack.c.b16 %v180, %v178
    %v221 = vpack.c.b16 %v181, %v179
    %v222 = vpack.c.b16 %v184, %v182
    %v223 = vpack.c.b16 %v185, %v183
    %v224 = vpack.c.b16 %v188, %v186
    %v225 = vpack.c.b16 %v189, %v187
    %v226 = vpack.c.b16 %v192, %v190
    %v227 = vpack.c.b16 %v193, %v191
    %v228 = vpack.c.b16 %v196, %v194
    %v229 = vpack.c.b16 %v197, %v195
    %262 = vmatpush.bf16.xpose.msra.mxu0 %v212
    %263 = vmatpush.bf16.xpose.msra.mxu0 %v210
    %264 = vmatpush.bf16.xpose.msra.mxu0 %v208
    %265 = vmatpush.bf16.xpose.msra.mxu0 %v206
    %266 = vmatpush.bf16.xpose.msra.mxu0 %v204
    %267 = vmatpush.bf16.xpose.msra.mxu0 %v202
    %268 = vmatpush.bf16.xpose.msra.mxu0 %v200
    %269 = vmatpush.bf16.xpose.msra.mxu0 %v198
    %270 = vmatmul.bf16.gmra.mxu0 %v98
    %v271 = vpop.f32.mrf.mxu0
    %v272 = vadd.f32 0.0, %v271
    %v273 = vpop.f32.mrf.mxu0
    %v274 = vadd.f32 0.0, %v273
    %275 = vdwg.mxu0
    %276 = vmatpush.bf16.xpose.msra.mxu0 %v213
    %277 = vmatpush.bf16.xpose.msra.mxu0 %v211
    %278 = vmatpush.bf16.xpose.msra.mxu0 %v209
    %279 = vmatpush.bf16.xpose.msra.mxu0 %v207
    %280 = vmatpush.bf16.xpose.msra.mxu0 %v205
    %281 = vmatpush.bf16.xpose.msra.mxu0 %v203
    %282 = vmatpush.bf16.xpose.msra.mxu0 %v201
    %283 = vmatpush.bf16.xpose.msra.mxu0 %v199
    %284 = vmatmul.bf16.gmra.mxu0 %v99
    %v285 = vpop.f32.mrf.mxu0
    %v286 = vadd.f32 %v272, %v285
    %v287 = vpop.f32.mrf.mxu0
    %v288 = vadd.f32 %v274, %v287
    %289 = vdwg.mxu0
    %290 = vmatpush.bf16.xpose.msra.mxu0 %v228
    %291 = vmatpush.bf16.xpose.msra.mxu0 %v226
    %292 = vmatpush.bf16.xpose.msra.mxu0 %v224
    %293 = vmatpush.bf16.xpose.msra.mxu0 %v222
    %294 = vmatpush.bf16.xpose.msra.mxu0 %v220
    %295 = vmatpush.bf16.xpose.msra.mxu0 %v218
    %296 = vmatpush.bf16.xpose.msra.mxu0 %v216
    %297 = vmatpush.bf16.xpose.msra.mxu0 %v214
    %298 = vmatmul.bf16.gmra.mxu0 %v98
    %v299 = vpop.f32.mrf.mxu0
    %v300 = vadd.f32 0.0, %v299
    %v301 = vpop.f32.mrf.mxu0
    %v302 = vadd.f32 0.0, %v301
    %303 = vdwg.mxu0
    %304 = vmatpush.bf16.xpose.msra.mxu0 %v229
    %305 = vmatpush.bf16.xpose.msra.mxu0 %v227
    %306 = vmatpush.bf16.xpose.msra.mxu0 %v225
    %307 = vmatpush.bf16.xpose.msra.mxu0 %v223
    %308 = vmatpush.bf16.xpose.msra.mxu0 %v221
    %309 = vmatpush.bf16.xpose.msra.mxu0 %v219
    %310 = vmatpush.bf16.xpose.msra.mxu0 %v217
    %311 = vmatpush.bf16.xpose.msra.mxu0 %v215
    %312 = vmatmul.bf16.gmra.mxu0 %v99
    %v313 = vpop.f32.mrf.mxu0
    %v314 = vadd.f32 %v300, %v313
    %v315 = vpop.f32.mrf.mxu0
    %v316 = vadd.f32 %v302, %v315
    %317 = vdwg.mxu0
    %318 = vst [vmem:[#allocation7] sm:$0xff] %v286
    %319 = vst [vmem:[#allocation7 + $0x8] sm:$0xff] %v314
    %320 = vst [vmem:[#allocation7 + $0x10] sm:$0xff] %v288
    %321 = vst [vmem:[#allocation7 + $0x18] sm:$0xff] %v316
    %v322 = vlaneseq
    %v323 = vshrl.u32 %v322, 7
    %v324 = vadd.s32 %v323, 8
    %s325 = smul.u32 0, 16
    %v326 = vstv %s325
    %v327 = vadd.s32 %v323, %v326
    %v328 = vadd.s32 %v324, %v326
    %v329 = vlaneseq
    %v330 = vand.u32 %v329, 127
    %v331 = vadd.s32 %v330, 128
    %s332 = smul.u32 0, 256
    %v333 = vstv %s332
    %v334 = vadd.s32 %v330, %v333
    %v335 = vadd.s32 %v331, %v333
    %v336 = vmul.u32 %v327, 16
    %v337 = vmul.u32 %v328, 16
    %vm338 = vcmp.eq.s32.totalorder %v334, %v336
    %vm339 = vcmp.eq.s32.totalorder %v335, %v336
    %vm340 = vcmp.eq.s32.totalorder %v334, %v337
    %vm341 = vcmp.eq.s32.totalorder %v335, %v337
    %v342 = vld [vmem:[%s3] sm:$0xff]
    %v343 = vld [vmem:[%s3 + $0x8] sm:$0xff]
    %v344 = vsel %vm338, %v286, 0.0
    %v345 = vsel %vm339, %v314, 0.0
    %v346 = vsel %vm340, %v288, 0.0
    %v347 = vsel %vm341, %v316, 0.0
    %v348 = vadd.f32 %v344, %v345
    %349 = vadd.xlane.f32.xlu0 %v348
    %v350 = vpop.xlane.xlu0 %349
    %v351 = vadd.f32 %v346, %v347
    %352 = vadd.xlane.f32.xlu0 %v351
    %v353 = vpop.xlane.xlu0 %352
    %v354 = vadd.f32 %v342, %v350
    %v355 = vadd.f32 %v343, %v353
    %vm356 = vcmask 7168
    %357 = vst.msk [vmem:[%s3] sm:$0xff] %vm356, %v354
    %358 = vst.msk [vmem:[%s3 + $0x8] sm:$0xff] %vm356, %v355
    %v359 = vsel %vm338, -inf, %v286
    %v360 = vsel %vm339, -inf, %v314
    %v361 = vsel %vm340, -inf, %v288
    %v362 = vsel %vm341, -inf, %v316
    %v363 = vld [vmem:[%s4] sm:$0xff]
    %v364 = vld [vmem:[%s4 + $0x8] sm:$0xff]
    %v365 = vmax.f32 %v359, %v360
    %366 = vmax.xlane.f32.xlu0 %v365
    %v367 = vpop.xlane.xlu0 %366
    %v368 = vmax.f32 %v361, %v362
    %369 = vmax.xlane.f32.xlu0 %v368
    %v370 = vpop.xlane.xlu0 %369
    %v371 = vmax.f32 %v363, %v367
    %v372 = vmax.f32 %v364, %v370
    %373 = vst.msk [vmem:[%s4] sm:$0xff] %vm356, %v371
    %374 = vst.msk [vmem:[%s4 + $0x8] sm:$0xff] %vm356, %v372
    // Predicated region
    $region22: #{tpu_custom_call.1} parent=1 // pred_check
      _
    $region23: #{tpu_custom_call.1} parent=1 // pred_check_branch
      %376 = sbr.rel (0) target = $region25
    $region24: #{tpu_custom_call.1} parent=1 // pred_region
      %378 = vsyncadd [#allocation4], 0
      %s379 = sshll.u32 [#allocation7], 4
      %s380 = int_to_ptr.vmem [resolvable:$true] %s379
      %s381 = sshll.u32 %s2, 4
      %s382 = int_to_ptr.hbm [resolvable:$true] %s381
      %387 = dma.vmem_to_hbm [thread:$0]  %s380, 512, %s382, [#allocation4], 256, 256, 16
    $region25: #{tpu_custom_call.1} parent=1 // pred_fallthru
      _
    // Predicated region
    $region26: #{tpu_custom_call.1} parent=1 // pred_check
      _
    $region27: #{tpu_custom_call.1} parent=1 // pred_check_branch
      %389 = sbr.rel (0) target = $region29
    $region28: #{tpu_custom_call.1} parent=1 // pred_region
      _
    $region29: #{tpu_custom_call.1} parent=1 // pred_fallthru
      _
    // Predicated region
    $region30: #{tpu_custom_call.1} parent=1 // pred_check
      _
    $region31: #{tpu_custom_call.1} parent=1 // pred_check_branch
      %391 = sbr.rel (0) target = $region33
    $region32: #{tpu_custom_call.1} parent=1 // pred_region
      _
    $region33: #{tpu_custom_call.1} parent=1 // pred_fallthru
      _
    // Predicated region
    $region34: #{tpu_custom_call.1} parent=1 // pred_check
      _
    $region35: #{tpu_custom_call.1} parent=1 // pred_check_branch
      %393 = sbr.rel (0) target = $region37
    $region36: #{tpu_custom_call.1} parent=1 // pred_region
      %395 = dma.done [#allocation4], 512
    $region37: #{tpu_custom_call.1} parent=1 // pred_fallthru
      _
    // Predicated region
    $region38: #{tpu_custom_call.1} parent=1 // pred_check
      _
    $region39: #{tpu_custom_call.1} parent=1 // pred_check_branch
      %397 = sbr.rel (0) target = $region41
    $region40: #{tpu_custom_call.1} parent=1 // pred_region
      _
    $region41: #{tpu_custom_call.1} parent=1 // pred_fallthru
      _
    // Predicated region
    $region42: #{tpu_custom_call.1} parent=1 // pred_check
      _
    $region43: #{tpu_custom_call.1} parent=1 // pred_check_branch
      %399 = sbr.rel (0) target = $region45
    $region44: #{tpu_custom_call.1} parent=1 // pred_region
      _
    $region45: #{tpu_custom_call.1} parent=1 // pred_fallthru
      _
    %400 = vsyncpa [#allocation3], 1
    %401 = vsyncpa [#allocation6], 1
    %402 = vsyncpa [#allocation4], 1

</llo_original>
